<compile_context>
chip_gen: v7x
topology: tpu7x:2x2x1
jax: 0.10.0
libtpu: 0.0.40
codegen_flags: <defaults>
</compile_context>

<pallas_src>
import functools

import jax
import jax.numpy as jnp
from jax.experimental import pallas as pl
from jax.experimental.pallas import tpu as pltpu

EPSILON = 1e-7
LANE_COLS = 1024  # default last-dim width (lanes); always a multiple of 128


def _tpu_tuning():
    """Returns (n_parallel_chunks, default block_rows at lane width 1024)."""
    try:
        kind = jax.devices()[0].device_kind.lower()
    except Exception:
        return 1, 512
    if "v7" in kind:
        # 2 TensorCores, 64 MiB VMEM, ~3.2 TB/s HBM -> split + bigger blocks.
        return 2, 1024
    if "v4" in kind or ("v5" in kind and "lite" not in kind and "v5e" not in kind):
        # v4 / v5p megacore: 2 TensorCores behind one device.
        return 2, 512
    # v5e / v6e / unknown: single TensorCore, 16-32 MiB scoped-VMEM default.
    return 1, 512


def _soft_f1_partials_kernel(yt_ref, yp_ref, out_ref,
                             s_prod_ref, s_yt_ref, s_yp_ref,
                             *, t_steps, full_blocks, partial_rows, gate_full):
    """Grid = (P, T): P parallel chunks x T sequential row-blocks per chunk.

    Accumulates sum(yt*yp), sum(yt), sum(yp) into vreg-shaped f32 VMEM scratch
    and writes the per-chunk partial sums to out_ref at the chunk's last step.
    """
    p = pl.program_id(0)
    t = pl.program_id(1)

    @pl.when(t == 0)
    def _():
        s_prod_ref[...] = jnp.zeros_like(s_prod_ref)
        s_yt_ref[...] = jnp.zeros_like(s_yt_ref)
        s_yp_ref[...] = jnp.zeros_like(s_yp_ref)

    acc_rows = s_prod_ref.shape[0]
    block_rows, cols = yt_ref.shape

    def accumulate(yt, yp):
        prod = yt * yp
        if block_rows == acc_rows:
            # Small-row case: accumulate directly.
            s_prod_ref[...] += prod
            s_yt_ref[...] += yt
            s_yp_ref[...] += yp
        else:
            # Fold rows in groups of acc_rows (=8): major-axis-only reshape + sum
            # over the outermost axis -> pure VPU adds, no XLU, no relayout.
            s_prod_ref[...] += prod.reshape(-1, acc_rows, cols).sum(axis=0)
            s_yt_ref[...] += yt.reshape(-1, acc_rows, cols).sum(axis=0)
            s_yp_ref[...] += yp.reshape(-1, acc_rows, cols).sum(axis=0)

    if not gate_full:
        # Fast path (the common case): every grid step maps to a distinct, fully
        # valid row-block -> no iota, no where, no scalar branches.
        accumulate(yt_ref[...].astype(jnp.float32),
                   yp_ref[...].astype(jnp.float32))
    else:
        logical = p * t_steps + t  # logical row-block index of this grid step

        @pl.when(logical < full_blocks)
        def _():
            # Fully valid block: unmasked accumulate (still the hot path).
            accumulate(yt_ref[...].astype(jnp.float32),
                       yp_ref[...].astype(jnp.float32))

        if partial_rows > 0:
            @pl.when(logical == full_blocks)
            def _():
                # The single ragged last row-block: Pallas only DMAs the valid
                # rows; the remaining rows of the VMEM buffer are undefined, so
                # they MUST be masked (do not remove this in any refactor).
                yt = yt_ref[...].astype(jnp.float32)
                yp = yp_ref[...].astype(jnp.float32)
                local_row = jax.lax.broadcasted_iota(jnp.int32, yt.shape, 0)
                valid = local_row < partial_rows
                accumulate(jnp.where(valid, yt, 0.0), jnp.where(valid, yp, 0.0))

        # Over-cover steps (logical >= number of real row-blocks) fall through
        # both branches: their (clamped, redundant) DMA is simply ignored.

    @pl.when(t == pl.num_programs(1) - 1)
    def _():
        out_ref[0, 0, :, :] = s_prod_ref[...]
        out_ref[0, 1, :, :] = s_yt_ref[...]
        out_ref[0, 2, :, :] = s_yp_ref[...]


def soft_f1_loss(y_pred, y_true, epsilon=EPSILON, *,
                 block_rows=None, lane_cols=LANE_COLS, n_par=None):
    """Pallas TPU implementation of SoftF1Loss.forward. Returns a scalar float32."""
    assert y_true.ndim == 1
    assert y_pred.ndim in (1, 2)
    assert lane_cols % 128 == 0
    if y_pred.ndim == 2:
        # Column select stays in plain JAX: the two per-sample columns are
        # interleaved at element granularity in HBM, so a fused in-kernel select
        # needs a stride-2 lane deinterleave.  This host slice costs one extra
        # read-2N/write-N pass (~40% of total HBM traffic on the 2D path).
        # TODO(synk): fuse the column-1 deinterleave into the kernel once
        # Mosaic stride-2 lane slices are verified on all target generations.
        y_pred = y_pred[:, 1]
    n = y_true.shape[0]
    assert y_pred.shape[0] == n
    assert n > 0

    cores, tuned_rows = _tpu_tuning()
    if n_par is None:
        n_par = cores
    if block_rows is None:
        block_rows = tuned_rows

    # ---- Lane-dense layout: view the sample axis as (rows, lc).  Prefer a lane
    # width that divides N so the host reshape is a copy-free bitcast.
    lc = lane_cols
    if n % lc:
        for cand in (512, 256, 128):
            if cand < lane_cols and n % cand == 0:
                lc = cand
                break
    block_rows = max(8, block_rows * (lane_cols // lc))  # keep ~constant block bytes

    rows = pl.cdiv(n, lc)
    n_pad = rows * lc
    if n_pad != n:
        # Fallback only (N not a multiple of 128): full-array pad copies both
        # inputs once.  Zeros contribute nothing to any of the three sums.
        # TODO(synk): stream the raw 1-D tail via a manual pl.ANY DMA instead.
        y_true = jnp.pad(y_true, (0, n_pad - n))
        y_pred = jnp.pad(y_pred, (0, n_pad - n))
    yt2 = y_true.reshape(rows, lc)   # original dtype; f32 cast happens in-kernel
    yp2 = y_pred.reshape(rows, lc)

    # ---- Row-block size: keep it a multiple of 8 whenever rows >= 8 so the
    # block sublane dim and the accumulator are always 8-aligned.
    if rows >= 8:
        br = min(block_rows, (rows // 8) * 8)
        br = max(8, (br // 8) * 8)
    else:
        br = rows
    acc_rows = 8 if br % 8 == 0 else br

    full_blocks = rows // br
    partial_rows = rows - full_blocks * br            # >0 => one ragged last block
    row_blocks = full_blocks + (1 if partial_rows else 0)

    # ---- Grid (P, T): leading "parallel" chunk axis (megacore / v7x 2-TC split),
    # trailing sequential reduction over row-blocks within each chunk.
    if row_blocks < 2:
        n_par = 1
    n_par = max(1, min(n_par, row_blocks))
    t_steps = pl.cdiv(row_blocks, n_par)
    # Gate the accumulate only if some grid step is NOT a fully valid full block
    # (ragged last block and/or over-cover from an uneven chunk split).
    gate_full = (n_par * t_steps != full_blocks)

    def in_map(p, t):
        # Clamp so over-cover steps re-read a valid block; the in-kernel
        # @pl.when gate drops their contribution.
        return (jnp.minimum(p * t_steps + t, row_blocks - 1), 0)

    kernel = functools.partial(
        _soft_f1_partials_kernel,
        t_steps=t_steps, full_blocks=full_blocks,
        partial_rows=partial_rows, gate_full=gate_full)

    partials = pl.pallas_call(
        kernel,
        out_shape=jax.ShapeDtypeStruct((n_par, 3, acc_rows, lc), jnp.float32),
        grid_spec=pltpu.PrefetchScalarGridSpec(
            num_scalar_prefetch=0,
            grid=(n_par, t_steps),
            in_specs=[
                pl.BlockSpec((br, lc), in_map),
                pl.BlockSpec((br, lc), in_map),
            ],
            out_specs=pl.BlockSpec((1, 3, acc_rows, lc),
                                   lambda p, t: (p, 0, 0, 0)),
            scratch_shapes=[
                pltpu.VMEM((acc_rows, lc), jnp.float32),  # sum(yt*yp)
                pltpu.VMEM((acc_rows, lc), jnp.float32),  # sum(yt)
                pltpu.VMEM((acc_rows, lc), jnp.float32),  # sum(yp)
            ],
        ),
        # "parallel" on the chunk axis is a no-op on 1-TC chips and shards the
        # chunks across TensorCores on megacore/v7x devices.
        compiler_params=pltpu.CompilerParams(
            dimension_semantics=("parallel", "arbitrary"),
        ),
    )(yt2, yp2)

    # ---- O(1) scalar epilogue in plain JAX: combine per-chunk partials, derive
    # fp/fn algebraically and apply the F1 formula.
    sums = jnp.sum(partials, axis=(0, 2, 3), dtype=jnp.float32)  # (3,)
    tp = sums[0]
    fp = sums[2] - sums[0]   # sum(yp) - sum(yt*yp) == sum((1-yt)*yp)
    fn = sums[1] - sums[0]   # sum(yt) - sum(yt*yp) == sum(yt*(1-yp))
    precision = tp / (tp + fp + epsilon)
    recall = tp / (tp + fn + epsilon)
    f1 = 2.0 * (precision * recall) / (precision + recall + epsilon)
    f1 = jnp.clip(f1, epsilon, 1.0 - epsilon)
    return (1.0 - f1).astype(jnp.float32)


def _soft_f1_loss_ref(y_pred, y_true, epsilon=EPSILON):
    """Pure-JAX reference mirroring the PyTorch module."""
    if y_pred.ndim == 2:
        y_pred = y_pred[:, 1]
    yt = y_true.astype(jnp.float32)
    yp = y_pred.astype(jnp.float32)
    tp = jnp.sum(yt * yp)
    fp = jnp.sum((1.0 - yt) * yp)
    fn = jnp.sum(yt * (1.0 - yp))
    precision = tp / (tp + fp + epsilon)
    recall = tp / (tp + fn + epsilon)
    f1 = 2.0 * (precision * recall) / (precision + recall + epsilon)
    f1 = jnp.clip(f1, epsilon, 1.0 - epsilon)
    return 1.0 - f1


if __name__ == "__main__":
    key = jax.random.PRNGKey(0)
    k1, k2, k3, k4, k5, k6 = jax.random.split(key, 6)

    # Small case matching the module's expected shapes: (N, 2) probs + (N,) labels.
    N = 8
    y_pred = jax.random.uniform(k1, (N, 2), dtype=jnp.float32)
    y_true = jax.random.bernoulli(k2, 0.5, (N,)).astype(jnp.float32)

    loss = jax.block_until_ready(soft_f1_loss(y_pred, y_true))
    ref = jax.block_until_ready(_soft_f1_loss_ref(y_pred, y_true))
    assert jnp.allclose(loss, ref, atol=1e-5, rtol=1e-5), (loss, ref)

    # 1-D y_pred path.
    loss1d = jax.block_until_ready(soft_f1_loss(y_pred[:, 1], y_true))
    ref1d = jax.block_until_ready(_soft_f1_loss_ref(y_pred[:, 1], y_true))
    assert jnp.allclose(loss1d, ref1d, atol=1e-5, rtol=1e-5), (loss1d, ref1d)

    # Ragged case: lane-tail pad fallback, multi-block grid, forced 2-way chunk
    # split and the gated mask on the single partial last row-block.
    M = 24613
    yp_m = jax.random.uniform(k3, (M,), dtype=jnp.float32)
    yt_m = jax.random.bernoulli(k4, 0.5, (M,)).astype(jnp.float32)
    loss_m = jax.block_until_ready(soft_f1_loss(yp_m, yt_m, block_rows=8, n_par=2))
    ref_m = jax.block_until_ready(_soft_f1_loss_ref(yp_m, yt_m))
    assert jnp.allclose(loss_m, ref_m, atol=1e-5, rtol=1e-5), (loss_m, ref_m)

    # Over-cover case: 3 full row-blocks with a forced 2-way split -> one grid
    # step maps past the last block and is skipped by the pl.when gate.
    M2 = 24 * 1024
    yp_o = jax.random.uniform(k5, (M2,), dtype=jnp.float32)
    yt_o = jax.random.bernoulli(k6, 0.5, (M2,)).astype(jnp.float32)
    loss_o = jax.block_until_ready(soft_f1_loss(yp_o, yt_o, block_rows=8, n_par=2))
    ref_o = jax.block_until_ready(_soft_f1_loss_ref(yp_o, yt_o))
    assert jnp.allclose(loss_o, ref_o, atol=1e-5, rtol=1e-5), (loss_o, ref_o)

    # Narrow-dtype case (bf16 inputs, copy-free reshape, unmasked fast path):
    # DMA stays bf16, accumulation is f32 in-kernel.
    M3 = 32 * 1024
    yp_b = jax.random.uniform(k5, (M3,), dtype=jnp.float32).astype(jnp.bfloat16)
    yt_b = jax.random.bernoulli(k6, 0.5, (M3,)).astype(jnp.bfloat16)
    loss_b = jax.block_until_ready(soft_f1_loss(yp_b, yt_b, block_rows=16, n_par=1))
    ref_b = jax.block_until_ready(_soft_f1_loss_ref(yp_b, yt_b))
    assert jnp.allclose(loss_b, ref_b, atol=1e-5, rtol=1e-5), (loss_b, ref_b)

    print("KERNEL_OK")
</pallas_src>

<mosaic_0001>
module attributes {stable_mosaic.version = 11 : i64} {
  func.func @_soft_f1_partials_kernel(%arg0: i32, %arg1: i32, %arg2: memref<1x1024xf32, #tpu.memory_space<vmem>>, %arg3: memref<1x1024xf32, #tpu.memory_space<vmem>>, %arg4: memref<1x3x1x1024xf32, #tpu.memory_space<vmem>>, %arg5: memref<1x1024xf32, #tpu.memory_space<vmem>>, %arg6: memref<1x1024xf32, #tpu.memory_space<vmem>>, %arg7: memref<1x1024xf32, #tpu.memory_space<vmem>>) attributes {dimension_semantics = [#tpu.dimension_semantics<parallel>, #tpu.dimension_semantics<arbitrary>], iteration_bounds = array<i64: 1, 1>, scalar_prefetch = 0 : i64, scratch_operands = 3 : i64, tpu.core_type = #tpu.core_type<tc>, window_params = [{transform_indices = @transform_0, window_bounds = array<i64: 1, 1024>}, {transform_indices = @transform_1, window_bounds = array<i64: 1, 1024>}, {transform_indices = @transform_2, window_bounds = array<i64: 1, 3, 1, 1024>}]} {
    %c0_i32 = arith.constant 0 : i32
    %0 = arith.cmpi eq, %arg1, %c0_i32 : i32
    %1 = arith.extui %0 : i1 to i32
    %c0_i32_0 = arith.constant 0 : i32
    %2 = arith.cmpi ne, %1, %c0_i32_0 : i32
    scf.if %2 {
      %cst = arith.constant 0.000000e+00 : f32
      %18 = vector.broadcast %cst : f32 to vector<1x1024xf32>
      %c0_18 = arith.constant 0 : index
      %c0_19 = arith.constant 0 : index
      %19 = vector.load %arg5[%c0_18, %c0_19] : memref<1x1024xf32, #tpu.memory_space<vmem>>, vector<1x1024xf32>
      tpu.vector_store %arg5[%c0_18, %c0_19], %18 {strides = array<i32>} : memref<1x1024xf32, #tpu.memory_space<vmem>>, vector<1x1024xf32>,
      %cst_20 = arith.constant 0.000000e+00 : f32
      %20 = vector.broadcast %cst_20 : f32 to vector<1x1024xf32>
      %c0_21 = arith.constant 0 : index
      %c0_22 = arith.constant 0 : index
      %21 = vector.load %arg6[%c0_21, %c0_22] : memref<1x1024xf32, #tpu.memory_space<vmem>>, vector<1x1024xf32>
      tpu.vector_store %arg6[%c0_21, %c0_22], %20 {strides = array<i32>} : memref<1x1024xf32, #tpu.memory_space<vmem>>, vector<1x1024xf32>,
      %cst_23 = arith.constant 0.000000e+00 : f32
      %22 = vector.broadcast %cst_23 : f32 to vector<1x1024xf32>
      %c0_24 = arith.constant 0 : index
      %c0_25 = arith.constant 0 : index
      %23 = vector.load %arg7[%c0_24, %c0_25] : memref<1x1024xf32, #tpu.memory_space<vmem>>, vector<1x1024xf32>
      tpu.vector_store %arg7[%c0_24, %c0_25], %22 {strides = array<i32>} : memref<1x1024xf32, #tpu.memory_space<vmem>>, vector<1x1024xf32>,
    } else {
    }
    %c0 = arith.constant 0 : index
    %c0_1 = arith.constant 0 : index
    %3 = vector.load %arg2[%c0, %c0_1] : memref<1x1024xf32, #tpu.memory_space<vmem>>, vector<1x1024xf32>
    %c0_2 = arith.constant 0 : index
    %c0_3 = arith.constant 0 : index
    %4 = vector.load %arg3[%c0_2, %c0_3] : memref<1x1024xf32, #tpu.memory_space<vmem>>, vector<1x1024xf32>
    %5 = arith.mulf %3, %4 : vector<1x1024xf32>
    %c0_4 = arith.constant 0 : index
    %c0_5 = arith.constant 0 : index
    %6 = vector.load %arg5[%c0_4, %c0_5] : memref<1x1024xf32, #tpu.memory_space<vmem>>, vector<1x1024xf32>
    %7 = arith.addf %6, %5 : vector<1x1024xf32>
    %c0_6 = arith.constant 0 : index
    %c0_7 = arith.constant 0 : index
    %8 = vector.load %arg5[%c0_6, %c0_7] : memref<1x1024xf32, #tpu.memory_space<vmem>>, vector<1x1024xf32>
    tpu.vector_store %arg5[%c0_6, %c0_7], %7 {strides = array<i32>} : memref<1x1024xf32, #tpu.memory_space<vmem>>, vector<1x1024xf32>,
    %c0_8 = arith.constant 0 : index
    %c0_9 = arith.constant 0 : index
    %9 = vector.load %arg6[%c0_8, %c0_9] : memref<1x1024xf32, #tpu.memory_space<vmem>>, vector<1x1024xf32>
    %10 = arith.addf %9, %3 : vector<1x1024xf32>
    %c0_10 = arith.constant 0 : index
    %c0_11 = arith.constant 0 : index
    %11 = vector.load %arg6[%c0_10, %c0_11] : memref<1x1024xf32, #tpu.memory_space<vmem>>, vector<1x1024xf32>
    tpu.vector_store %arg6[%c0_10, %c0_11], %10 {strides = array<i32>} : memref<1x1024xf32, #tpu.memory_space<vmem>>, vector<1x1024xf32>,
    %c0_12 = arith.constant 0 : index
    %c0_13 = arith.constant 0 : index
    %12 = vector.load %arg7[%c0_12, %c0_13] : memref<1x1024xf32, #tpu.memory_space<vmem>>, vector<1x1024xf32>
    %13 = arith.addf %12, %4 : vector<1x1024xf32>
    %c0_14 = arith.constant 0 : index
    %c0_15 = arith.constant 0 : index
    %14 = vector.load %arg7[%c0_14, %c0_15] : memref<1x1024xf32, #tpu.memory_space<vmem>>, vector<1x1024xf32>
    tpu.vector_store %arg7[%c0_14, %c0_15], %13 {strides = array<i32>} : memref<1x1024xf32, #tpu.memory_space<vmem>>, vector<1x1024xf32>,
    %c0_i32_16 = arith.constant 0 : i32
    %15 = arith.cmpi eq, %arg1, %c0_i32_16 : i32
    %16 = arith.extui %15 : i1 to i32
    %c0_i32_17 = arith.constant 0 : i32
    %17 = arith.cmpi ne, %16, %c0_i32_17 : i32
    scf.if %17 {
      %c0_18 = arith.constant 0 : index
      %c0_19 = arith.constant 0 : index
      %18 = vector.load %arg5[%c0_18, %c0_19] : memref<1x1024xf32, #tpu.memory_space<vmem>>, vector<1x1024xf32>
      %c0_20 = arith.constant 0 : index
      %c0_21 = arith.constant 0 : index
      %c0_22 = arith.constant 0 : index
      %c0_23 = arith.constant 0 : index
      %19 = vector.load %arg4[%c0_20, %c0_21, %c0_22, %c0_23] : memref<1x3x1x1024xf32, #tpu.memory_space<vmem>>, vector<1x1x1x1024xf32>
      %20 = vector.shape_cast %19 : vector<1x1x1x1024xf32> to vector<1x1024xf32>
      %21 = vector.shape_cast %18 : vector<1x1024xf32> to vector<1x1x1x1024xf32>
      tpu.vector_store %arg4[%c0_20, %c0_21, %c0_22, %c0_23], %21 {strides = array<i32>} : memref<1x3x1x1024xf32, #tpu.memory_space<vmem>>, vector<1x1x1x1024xf32>,
      %c0_24 = arith.constant 0 : index
      %c0_25 = arith.constant 0 : index
      %22 = vector.load %arg6[%c0_24, %c0_25] : memref<1x1024xf32, #tpu.memory_space<vmem>>, vector<1x1024xf32>
      %c0_26 = arith.constant 0 : index
      %c1 = arith.constant 1 : index
      %c0_27 = arith.constant 0 : index
      %c0_28 = arith.constant 0 : index
      %23 = vector.load %arg4[%c0_26, %c1, %c0_27, %c0_28] : memref<1x3x1x1024xf32, #tpu.memory_space<vmem>>, vector<1x1x1x1024xf32>
      %24 = vector.shape_cast %23 : vector<1x1x1x1024xf32> to vector<1x1024xf32>
      %25 = vector.shape_cast %22 : vector<1x1024xf32> to vector<1x1x1x1024xf32>
      tpu.vector_store %arg4[%c0_26, %c1, %c0_27, %c0_28], %25 {strides = array<i32>} : memref<1x3x1x1024xf32, #tpu.memory_space<vmem>>, vector<1x1x1x1024xf32>,
      %c0_29 = arith.constant 0 : index
      %c0_30 = arith.constant 0 : index
      %26 = vector.load %arg7[%c0_29, %c0_30] : memref<1x1024xf32, #tpu.memory_space<vmem>>, vector<1x1024xf32>
      %c0_31 = arith.constant 0 : index
      %c2 = arith.constant 2 : index
      %c0_32 = arith.constant 0 : index
      %c0_33 = arith.constant 0 : index
      %27 = vector.load %arg4[%c0_31, %c2, %c0_32, %c0_33] : memref<1x3x1x1024xf32, #tpu.memory_space<vmem>>, vector<1x1x1x1024xf32>
      %28 = vector.shape_cast %27 : vector<1x1x1x1024xf32> to vector<1x1024xf32>
      %29 = vector.shape_cast %26 : vector<1x1024xf32> to vector<1x1x1x1024xf32>
      tpu.vector_store %arg4[%c0_31, %c2, %c0_32, %c0_33], %29 {strides = array<i32>} : memref<1x3x1x1024xf32, #tpu.memory_space<vmem>>, vector<1x1x1x1024xf32>,
    } else {
    }
    return
  }
  func.func @transform_0(%arg0: i32, %arg1: i32) -> (i32, i32) {
    %c1_i32 = arith.constant 1 : i32
    %0 = arith.muli %arg0, %c1_i32 : i32
    %1 = arith.addi %0, %arg1 : i32
    %c0_i32 = arith.constant 0 : i32
    %2 = arith.minsi %1, %c0_i32 : i32
    %c0_i32_0 = arith.constant 0 : i32
    %c0_i32_1 = arith.constant 0 : i32
    return %2, %c0_i32_0 : i32, i32
  }
  func.func @transform_1(%arg0: i32, %arg1: i32) -> (i32, i32) {
    %c1_i32 = arith.constant 1 : i32
    %0 = arith.muli %arg0, %c1_i32 : i32
    %1 = arith.addi %0, %arg1 : i32
    %c0_i32 = arith.constant 0 : i32
    %2 = arith.minsi %1, %c0_i32 : i32
    %c0_i32_0 = arith.constant 0 : i32
    %c0_i32_1 = arith.constant 0 : i32
    return %2, %c0_i32_0 : i32, i32
  }
  func.func @transform_2(%arg0: i32, %arg1: i32) -> (i32, i32, i32, i32) {
    %c0_i32 = arith.constant 0 : i32
    %c0_i32_0 = arith.constant 0 : i32
    %c0_i32_1 = arith.constant 0 : i32
    %c0_i32_2 = arith.constant 0 : i32
    return %arg0, %c0_i32, %c0_i32_0, %c0_i32_1 : i32, i32, i32, i32
  }
}

</mosaic_0001>

<llo_original>
// kernel: tpu_custom_call.1
$region0: #{tpu_custom_call.1}
  #allocation0 [shape = 'u32[]', space=smem, size = 0x4, offset = 0x4, fixed_abs, tag = 'smem constant byte address 0x4 - core index']
  #allocation1 [shape = 'u32[144,128]{1,0:T(1,128)}', space=vmem, size = 0x12000, scoped, tag = 'internal scratch']
  #allocation2 [shape = 'f32[1,1024]{1,0:T(1,128)}', space=vmem, size = 0x1000, scoped, tag = 'scratch operand']
  #allocation3 [shape = 'f32[1,1024]{1,0:T(1,128)}', space=vmem, size = 0x1000, scoped, tag = 'scratch operand']
  #allocation4 [shape = 'f32[1,1024]{1,0:T(1,128)}', space=vmem, size = 0x1000, scoped, tag = 'scratch operand']
  %s0 = inlined_call_operand.hbm [shape: f32[1,1024], index: 0, kind: input, shape index: {}]
  %s1 = inlined_call_operand.hbm [shape: f32[1,1024], index: 1, kind: input, shape index: {}]
  %s2 = inlined_call_operand.hbm [shape: f32[1,3,1,1024], index: 2, kind: output, shape index: {}]
  %s3 = sld [smem:[#allocation0]]
  $region34: #{tpu_custom_call.1} parent=0
    _
  %s5 = ssub.s32 1, %s3
  %s6 = scalar_select 0, %s5, %s3
  $region1: #{tpu_custom_call.1} parent=0
    #allocation5 [shape = 'u8[4096]{0}', space=vmem, size = 0x1000, scoped, tag = 'input window, operand 0, single buffered']
    #allocation6 [shape = 's32[1]{0}', space=sflag, size = 0x4, scoped, tag = 'scoped memory for tpu_custom_call.1']
    #allocation7 [shape = 's32[1]{0}', space=sflag, size = 0x4, scoped, tag = 'scoped memory for tpu_custom_call.1']
    #allocation8 [shape = 'u8[4096]{0}', space=vmem, size = 0x1000, scoped, tag = 'input window, operand 1, single buffered']
    #allocation9 [shape = 's32[1]{0}', space=sflag, size = 0x4, scoped, tag = 'scoped memory for tpu_custom_call.1']
    #allocation10 [shape = 'u8[12288]{0}', space=vmem, size = 0x3000, scoped, tag = 'output window, operand 0, single buffered']
    %7 = vsyncpa [#allocation6], 0
    %8 = vsyncpa [#allocation9], 0
    %9 = vsyncpa [#allocation7], 0
    // Predicated region
    $region2: #{tpu_custom_call.1} parent=1 // pred_check
      _
    $region3: #{tpu_custom_call.1} parent=1 // pred_check_branch
      %11 = sbr.rel (0) target = $region5
    $region4: #{tpu_custom_call.1} parent=1 // pred_region
      %s12 = sadd.s32 0, 0
      %p13 = scmp.lt.s32.totalorder %s12, 0
      %s14 = scalar_select %p13, %s12, 0
      %s16 = ssub.s32 128, 128
      %17 = vsyncadd [#allocation6], %s16
      %s18 = smul.addr %s14, 8
      %s19 = smul.addr %s18, 16
      %s20 = scalar_lea.hbm %s0, %s19
      %s22 = sshll.u32 [#allocation5], 4
      %s23 = int_to_ptr.vmem [resolvable:$true] %s22
      %25 = dma.hbm_to_vmem [thread:$0]  %s20, 128, %s23, [#allocation6]
    $region5: #{tpu_custom_call.1} parent=1 // pred_fallthru
      _
    // Predicated region
    $region6: #{tpu_custom_call.1} parent=1 // pred_check
      _
    $region7: #{tpu_custom_call.1} parent=1 // pred_check_branch
      %27 = sbr.rel (0) target = $region9
    $region8: #{tpu_custom_call.1} parent=1 // pred_region
      %s28 = sadd.s32 0, 0
      %p29 = scmp.lt.s32.totalorder %s28, 0
      %s30 = scalar_select %p29, %s28, 0
      %s32 = ssub.s32 128, 128
      %33 = vsyncadd [#allocation9], %s32
      %s34 = smul.addr %s30, 8
      %s35 = smul.addr %s34, 16
      %s36 = scalar_lea.hbm %s1, %s35
      %s38 = sshll.u32 [#allocation8], 4
      %s39 = int_to_ptr.vmem [resolvable:$true] %s38
      %41 = dma.hbm_to_vmem [thread:$0]  %s36, 128, %s39, [#allocation9]
    $region9: #{tpu_custom_call.1} parent=1 // pred_fallthru
      _
    // Predicated region
    $region10: #{tpu_custom_call.1} parent=1 // pred_check
      _
    $region11: #{tpu_custom_call.1} parent=1 // pred_check_branch
      %43 = sbr.rel (0) target = $region13
    $region12: #{tpu_custom_call.1} parent=1 // pred_region
      %44 = dma.done [#allocation6], 128
    $region13: #{tpu_custom_call.1} parent=1 // pred_fallthru
      _
    // Predicated region
    $region14: #{tpu_custom_call.1} parent=1 // pred_check
      _
    $region15: #{tpu_custom_call.1} parent=1 // pred_check_branch
      %46 = sbr.rel (0) target = $region17
    $region16: #{tpu_custom_call.1} parent=1 // pred_region
      %47 = dma.done [#allocation9], 128
    $region17: #{tpu_custom_call.1} parent=1 // pred_fallthru
      _
    %s48 = sadd.s32 0, 0
    %p49 = scmp.lt.s32.totalorder %s48, 0
    %s50 = scalar_select %p49, %s48, 0
    %s51 = sadd.s32 0, 0
    %p52 = scmp.lt.s32.totalorder %s51, 0
    %s53 = scalar_select %p52, %s51, 0
    %p54 = scmp.eq.s32.totalorder 0, 0
    // Predicated region
    $region18: #{tpu_custom_call.1} parent=1 // pred_check
      %p55 = pneg %p54
    $region19: #{tpu_custom_call.1} parent=1 // pred_check_branch
      %57 = sbr.rel (%p55) target = $region21
    $region20: #{tpu_custom_call.1} parent=1 // pred_region
      %58 = vst [vmem:[#allocation2] sm:$0xff] 0.0
      %59 = vst [vmem:[#allocation3] sm:$0xff] 0.0
      %60 = vst [vmem:[#allocation4] sm:$0xff] 0.0
    $region21: #{tpu_custom_call.1} parent=1 // pred_fallthru
      _
    %v61 = vld [vmem:[#allocation5] sm:$0xff]
    %v62 = vld [vmem:[#allocation8] sm:$0xff]
    %v63 = vmul.f32 %v61, %v62
    %v64 = vld [vmem:[#allocation2] sm:$0xff]
    %v65 = vadd.f32 %v64, %v63
    %66 = vst [vmem:[#allocation2] sm:$0xff] %v65
    %v67 = vld [vmem:[#allocation3] sm:$0xff]
    %v68 = vadd.f32 %v67, %v61
    %69 = vst [vmem:[#allocation3] sm:$0xff] %v68
    %v70 = vld [vmem:[#allocation4] sm:$0xff]
    %v71 = vadd.f32 %v70, %v62
    %72 = vst [vmem:[#allocation4] sm:$0xff] %v71
    // Predicated region
    $region22: #{tpu_custom_call.1} parent=1 // pred_check
      %p73 = pneg %p54
    $region23: #{tpu_custom_call.1} parent=1 // pred_check_branch
      %75 = sbr.rel (%p73) target = $region25
    $region24: #{tpu_custom_call.1} parent=1 // pred_region
      %v76 = vld [vmem:[#allocation2] sm:$0xff]
      %77 = vst [vmem:[#allocation10] sm:$0xff] %v76
      %v78 = vld [vmem:[#allocation3] sm:$0xff]
      %s79 = scalar_lea.vmem [#allocation10], 8
      %80 = vst [vmem:[%s79] sm:$0xff] %v78
      %v81 = vld [vmem:[#allocation4] sm:$0xff]
      %s82 = scalar_lea.vmem [#allocation10], 16
      %83 = vst [vmem:[%s82] sm:$0xff] %v81
    $region25: #{tpu_custom_call.1} parent=1 // pred_fallthru
      _
    // Predicated region
    $region26: #{tpu_custom_call.1} parent=1 // pred_check
      _
    $region27: #{tpu_custom_call.1} parent=1 // pred_check_branch
      %85 = sbr.rel (0) target = $region29
    $region28: #{tpu_custom_call.1} parent=1 // pred_region
      %s87 = ssub.s32 384, 384
      %88 = vsyncadd [#allocation7], %s87
      %s89 = sshll.u32 [#allocation10], 4
      %s90 = int_to_ptr.vmem [resolvable:$true] %s89
      %95 = dma.vmem_to_hbm [thread:$0]  %s90, 384, %s2, [#allocation7], 128, 128, 8
    $region29: #{tpu_custom_call.1} parent=1 // pred_fallthru
      _
    // Predicated region
    $region30: #{tpu_custom_call.1} parent=1 // pred_check
      _
    $region31: #{tpu_custom_call.1} parent=1 // pred_check_branch
      %97 = sbr.rel (0) target = $region33
    $region32: #{tpu_custom_call.1} parent=1 // pred_region
      %98 = dma.done [#allocation7], 384
    $region33: #{tpu_custom_call.1} parent=1 // pred_fallthru
      _
    %99 = vsyncpa [#allocation6], 1
    %100 = vsyncpa [#allocation9], 1
    %101 = vsyncpa [#allocation7], 1

</llo_original>
